<compile_context>
chip_gen: v7x
topology: tpu7x:2x2x1
jax: 0.10.0
libtpu: 0.0.40
codegen_flags: <defaults>
</compile_context>

<pallas_src>
import functools

import jax
import jax.numpy as jnp
from jax import lax
from jax.experimental import pallas as pl
from jax.experimental.pallas import tpu as pltpu


def lwff_kernel(x_ref, w1_ref, w2_ref, o_ref, *, inv_hw):
    # x_ref / o_ref block: (Bt, C, HW); w1: (Cr, C); w2: (Cr, C).
    x = x_ref[...]                                   # native dtype; no full f32 copy
    bt = x.shape[0]

    # --- global avg / max pooling over the spatial lanes ---------------------
    # Block extent == true HW (no pad lanes), so no iota/where mask is needed;
    # sum accumulates in f32, max is exact in the native dtype.
    y_avg = jnp.sum(x, axis=-1, dtype=jnp.float32) * inv_hw    # (Bt, C)
    y_max = jnp.max(x, axis=-1).astype(jnp.float32)            # (Bt, C)

    # --- fused squeeze-excite FC: both branches & all Bt rows in one matmul pair
    y = jnp.concatenate([y_avg, y_max], axis=0)      # (2*Bt, C)
    w1 = w1_ref[...].astype(jnp.float32)             # (Cr, C)  == PyTorch fc[0].weight
    w2 = w2_ref[...].astype(jnp.float32)             # (Cr, C)  == PyTorch fc[2].weight.T
    h = lax.dot_general(y, w1, (((1,), (1,)), ((), ())),
                        preferred_element_type=jnp.float32)    # (2*Bt, Cr)
    h = jnp.maximum(h, 0.0)                                    # ReLU
    s = jax.nn.sigmoid(jnp.dot(h, w2, preferred_element_type=jnp.float32))  # (2*Bt, C)
    gate = s[:bt] + s[bt:]                           # sigmoid(avg path) + sigmoid(max path)

    # Apply per-(batch, channel) gate staying in the input dtype.
    # NOTE: for bf16/fp16 inputs the gate is rounded to x.dtype before the
    # multiply; the reference multiplies in f32 then casts (tiny difference).
    o_ref[...] = (x * gate[:, :, None].astype(x.dtype)).astype(o_ref.dtype)


def _pick_bt(b, c, hw, itemsize, budget_bytes):
    """Largest batch-tile whose pipelined blocks (+ in-kernel temporaries) fit
    the budget. Prefers an even grid step count >= 4 (balances v7x's 2
    TensorCores and gives the DMA pipeline room to overlap), then >= 2."""
    def step_bytes(bt):
        io = 4 * bt * c * hw * itemsize           # double-buffered in + out blocks
        tmp = bt * c * hw * max(itemsize, 4)      # headroom for the gated-mul temporary
        return io + tmp

    divisors = [d for d in range(1, b + 1) if b % d == 0]
    fits = [d for d in divisors if step_bytes(d) <= budget_bytes]
    if not fits:
        # TODO(synk): spatial-tiled two-pass path for single-batch-row blocks
        # that exceed VMEM; not needed for PSCTNet's LWFF instances
        # (<= 1024x196, 128x3136 -> < 2 MiB per row).
        return 1
    pref4 = [d for d in fits if (b // d) >= 4 and (b // d) % 2 == 0]
    if pref4:
        return max(pref4)
    pref2 = [d for d in fits if (b // d) >= 2]
    if pref2:
        return max(pref2)
    return max(fits)


def lwff_forward(x, w1, w2, *, block_budget_bytes=24 << 20,
                 vmem_limit_bytes=48 << 20, alias_input=False):
    """x: (B, C, H, W) NCHW; w1: (C//r, C) = fc[0].weight; w2: (C//r, C) = fc[2].weight.T.

    Defaults are sized for v7x's 64 MiB VMEM (limit <= 48 MiB, temporaries
    counted in the budget); on v5e/v6e (128 MiB VMEM) larger budgets may be
    passed to amortize per-step pipeline overhead on big batches."""
    b, c, h, w = x.shape
    hw = h * w
    cr = w1.shape[0]
    itemsize = jnp.dtype(x.dtype).itemsize

    # No spatial padding and no slice-back: block last-two dims equal the full
    # array dims, keeping this bandwidth-bound op at one read + one write of x.
    x_flat = x.reshape(b, c, hw)
    bt = _pick_bt(b, c, hw, itemsize, block_budget_bytes)

    cost = pl.CostEstimate(
        flops=2 * (2 * b) * c * cr * 2 + 3 * b * c * hw,
        transcendentals=2 * b * c,
        bytes_accessed=2 * b * c * hw * itemsize
                       + 2 * cr * c * jnp.dtype(w1.dtype).itemsize,
    )

    kern = functools.partial(lwff_kernel, inv_hw=1.0 / hw)
    out = pl.pallas_call(
        kern,
        out_shape=jax.ShapeDtypeStruct((b, c, hw), x.dtype),
        grid_spec=pltpu.PrefetchScalarGridSpec(
            num_scalar_prefetch=0,
            grid=(b // bt,),
            in_specs=[
                pl.BlockSpec((bt, c, hw), lambda i: (i, 0, 0)),
                pl.BlockSpec((cr, c), lambda i: (0, 0)),
                pl.BlockSpec((cr, c), lambda i: (0, 0)),
            ],
            out_specs=pl.BlockSpec((bt, c, hw), lambda i: (i, 0, 0)),
        ),
        compiler_params=pltpu.CompilerParams(
            dimension_semantics=("parallel",),
            vmem_limit_bytes=vmem_limit_bytes),
        cost_estimate=cost,
        # In-place gate when the flattened input is a dead temporary in the
        # surrounding graph (avoids a separate HBM output allocation).
        input_output_aliases=({0: 0} if alias_input else {}),
    )(x_flat, w1, w2)
    return out.reshape(b, c, h, w)


def lwff_reference(x, w1, w2):
    xf = x.astype(jnp.float32)
    y1 = jnp.mean(xf, axis=(2, 3))                 # (B, C)
    y2 = jnp.max(xf, axis=(2, 3))                  # (B, C)

    def fc(y):
        h = jnp.maximum(y @ w1.T, 0.0)             # Linear(C, Cr), weight (Cr, C)
        return jax.nn.sigmoid(h @ w2)              # Linear(Cr, C), weight.T = (Cr, C)

    gate = fc(y1) + fc(y2)                         # (B, C)
    return (xf * gate[:, :, None, None]).astype(x.dtype)


if __name__ == "__main__":
    # Small shapes consistent with the module; H=W=14 (HW=196, not a multiple
    # of 128) exercises the unpadded, masked-tail-store path.
    B, C, H, W = 2, 32, 14, 14
    r = 4
    Cr = C // r

    key = jax.random.PRNGKey(0)
    kx, k1, k2 = jax.random.split(key, 3)

    x = jax.random.normal(kx, (B, C, H, W), dtype=jnp.float32)
    # Linear layers have bias=False. w1 is stored in PyTorch layout (out, in)
    # = (Cr, C); w2 is stored transposed (in, out) = (Cr, C) so both weights
    # feeding the MXU are lane-dense in C inside the kernel.
    w1 = jax.random.normal(k1, (Cr, C), dtype=jnp.float32) * 0.1   # fc[0].weight
    w2 = jax.random.normal(k2, (Cr, C), dtype=jnp.float32) * 0.1   # fc[2].weight.T

    out = lwff_forward(x, w1, w2)
    out = jax.block_until_ready(out)

    ref = lwff_reference(x, w1, w2)
    assert out.shape == (B, C, H, W)
    assert jnp.allclose(out, ref, atol=1e-5, rtol=1e-5), "mismatch vs reference"

    print("KERNEL_OK")
</pallas_src>

<mosaic_0001>
module attributes {stable_mosaic.version = 11 : i64} {
  func.func @lwff_kernel(%arg0: i32, %arg1: memref<1x32x196xf32, #tpu.memory_space<vmem>>, %arg2: memref<8x32xf32, #tpu.memory_space<vmem>>, %arg3: memref<8x32xf32, #tpu.memory_space<vmem>>, %arg4: memref<1x32x196xf32, #tpu.memory_space<vmem>>) attributes {dimension_semantics = [#tpu.dimension_semantics<parallel>], iteration_bounds = array<i64: 2>, scalar_prefetch = 0 : i64, scratch_operands = 0 : i64, tpu.core_type = #tpu.core_type<tc>, window_params = [{transform_indices = @transform_0, window_bounds = array<i64: 1, 32, 196>}, {pipeline_mode = #tpu.pipeline_mode<synchronous>, transform_indices = @transform_1, window_bounds = array<i64: 8, 32>}, {pipeline_mode = #tpu.pipeline_mode<synchronous>, transform_indices = @transform_2, window_bounds = array<i64: 8, 32>}, {transform_indices = @transform_3, window_bounds = array<i64: 1, 32, 196>}]} {
    %c0 = arith.constant 0 : index
    %c0_0 = arith.constant 0 : index
    %c0_1 = arith.constant 0 : index
    %0 = vector.load %arg1[%c0, %c0_0, %c0_1] : memref<1x32x196xf32, #tpu.memory_space<vmem>>, vector<1x32x196xf32>
    %cst = arith.constant dense<0.000000e+00> : vector<1x32xf32>
    %1 = vector.multi_reduction <add>, %0, %cst [2] : vector<1x32x196xf32> to vector<1x32xf32>
    %cst_2 = arith.constant 0.00510204071 : f32
    %2 = vector.broadcast %cst_2 : f32 to vector<1x32xf32>
    %3 = arith.mulf %1, %2 : vector<1x32xf32>
    %cst_3 = arith.constant dense<0xFF800000> : vector<1x32xf32>
    %4 = vector.multi_reduction <maximumf>, %0, %cst_3 [2] : vector<1x32x196xf32> to vector<1x32xf32>
    %5 = tpu.concatenate %3, %4 in 0 : vector<1x32xf32>, vector<1x32xf32> -> vector<2x32xf32>
    %c0_4 = arith.constant 0 : index
    %c0_5 = arith.constant 0 : index
    %6 = vector.load %arg2[%c0_4, %c0_5] : memref<8x32xf32, #tpu.memory_space<vmem>>, vector<8x32xf32>
    %c0_6 = arith.constant 0 : index
    %c0_7 = arith.constant 0 : index
    %7 = vector.load %arg3[%c0_6, %c0_7] : memref<8x32xf32, #tpu.memory_space<vmem>>, vector<8x32xf32>
    %cst_8 = arith.constant dense<0.000000e+00> : vector<2x8xf32>
    %8 = tpu.matmul %5, %6, %cst_8 {dimension_numbers = #tpu.dot_dimension_numbers<[1], [1], [0], [0], [0, 0, 1, 0], [], []>} : vector<2x32xf32>, vector<8x32xf32>, vector<2x8xf32> -> vector<2x8xf32>
    %cst_9 = arith.constant 0.000000e+00 : f32
    %9 = vector.broadcast %cst_9 : f32 to vector<2x8xf32>
    %10 = arith.maximumf %8, %9 : vector<2x8xf32>
    %cst_10 = arith.constant dense<0.000000e+00> : vector<2x32xf32>
    %11 = tpu.matmul %10, %7, %cst_10 {dimension_numbers = #tpu.dot_dimension_numbers<[1], [0], [0], [1], [0, 0, 1, 1], [], []>} : vector<2x8xf32>, vector<8x32xf32>, vector<2x32xf32> -> vector<2x32xf32>
    %12 = arith.negf %11 : vector<2x32xf32>
    %13 = math.exp %12 : vector<2x32xf32>
    %cst_11 = arith.constant 1.000000e+00 : f32
    %14 = vector.broadcast %cst_11 : f32 to vector<2x32xf32>
    %15 = arith.addf %14, %13 : vector<2x32xf32>
    %16 = arith.divf %14, %15 : vector<2x32xf32>
    %17 = vector.extract_strided_slice %16 {offsets = [0, 0], sizes = [1, 32], strides = [1, 1]} : vector<2x32xf32> to vector<1x32xf32>
    %18 = vector.extract_strided_slice %16 {offsets = [1, 0], sizes = [1, 32], strides = [1, 1]} : vector<2x32xf32> to vector<1x32xf32>
    %19 = arith.addf %17, %18 : vector<1x32xf32>
    %20 = vector.shape_cast %19 : vector<1x32xf32> to vector<1x32x1xf32>
    %21 = vector.broadcast %20 : vector<1x32x1xf32> to vector<1x32x196xf32>
    %22 = arith.mulf %0, %21 : vector<1x32x196xf32>
    %c0_12 = arith.constant 0 : index
    %c0_13 = arith.constant 0 : index
    %c0_14 = arith.constant 0 : index
    %23 = vector.load %arg4[%c0_12, %c0_13, %c0_14] : memref<1x32x196xf32, #tpu.memory_space<vmem>>, vector<1x32x196xf32>
    tpu.vector_store %arg4[%c0_12, %c0_13, %c0_14], %22 {strides = array<i32>} : memref<1x32x196xf32, #tpu.memory_space<vmem>>, vector<1x32x196xf32>,
    return
  }
  func.func @transform_0(%arg0: i32) -> (i32, i32, i32) {
    %c0_i32 = arith.constant 0 : i32
    %c0_i32_0 = arith.constant 0 : i32
    %c0_i32_1 = arith.constant 0 : i32
    return %arg0, %c0_i32, %c0_i32_0 : i32, i32, i32
  }
  func.func @transform_1(%arg0: i32) -> (i32, i32) {
    %c0_i32 = arith.constant 0 : i32
    %c0_i32_0 = arith.constant 0 : i32
    %c0_i32_1 = arith.constant 0 : i32
    return %c0_i32, %c0_i32_0 : i32, i32
  }
  func.func @transform_2(%arg0: i32) -> (i32, i32) {
    %c0_i32 = arith.constant 0 : i32
    %c0_i32_0 = arith.constant 0 : i32
    %c0_i32_1 = arith.constant 0 : i32
    return %c0_i32, %c0_i32_0 : i32, i32
  }
  func.func @transform_3(%arg0: i32) -> (i32, i32, i32) {
    %c0_i32 = arith.constant 0 : i32
    %c0_i32_0 = arith.constant 0 : i32
    %c0_i32_1 = arith.constant 0 : i32
    return %arg0, %c0_i32, %c0_i32_0 : i32, i32, i32
  }
}

</mosaic_0001>

<llo_original>
// kernel: tpu_custom_call.1
$region0: #{tpu_custom_call.1}
  #allocation0 [shape = 'u32[]', space=smem, size = 0x4, offset = 0x4, fixed_abs, tag = 'smem constant byte address 0x4 - core index']
  #allocation1 [shape = 'u32[144,128]{1,0:T(1,128)}', space=vmem, size = 0x12000, scoped, tag = 'internal scratch']
  %s0 = inlined_call_operand.hbm [shape: f32[2,32,196], index: 0, kind: input, shape index: {}]
  %s1 = inlined_call_operand.hbm [shape: f32[8,32], index: 1, kind: input, shape index: {}]
  %s2 = inlined_call_operand.hbm [shape: f32[8,32], index: 2, kind: input, shape index: {}]
  %s3 = inlined_call_operand.hbm [shape: f32[2,32,196], index: 3, kind: output, shape index: {}]
  %s4 = sld [smem:[#allocation0]]
  $region57: #{tpu_custom_call.1} parent=0
    _
  %s6 = ssub.s32 1, %s4
  %s7 = scalar_select 0, %s6, %s4
  $region1: #{tpu_custom_call.1} parent=0
    #allocation2 [shape = 'u8[65536]{0}', space=vmem, size = 0x10000, scoped, tag = 'input window, operand 0']
    #allocation3 [shape = 's32[2]{0}', space=sflag, size = 0x8, scoped, tag = 'scoped memory for tpu_custom_call.1']
    #allocation4 [shape = 's32[2]{0}', space=sflag, size = 0x8, scoped, tag = 'scoped memory for tpu_custom_call.1']
    #allocation5 [shape = 'u8[4096]{0}', space=vmem, size = 0x1000, scoped, tag = 'input window, operand 1, single buffered']
    #allocation6 [shape = 's32[1]{0}', space=sflag, size = 0x4, scoped, tag = 'scoped memory for tpu_custom_call.1']
    #allocation7 [shape = 'u8[4096]{0}', space=vmem, size = 0x1000, scoped, tag = 'input window, operand 2, single buffered']
    #allocation8 [shape = 'u8[65536]{0}', space=vmem, size = 0x10000, scoped, tag = 'output window, operand 0']
    %8 = vsyncpa [#allocation3], 0
    %s9 = scalar_lea.sflag [#allocation3], 1
    %10 = vsyncpa %s9, 0
    %11 = vsyncpa [#allocation6], 0
    %12 = vsyncpa [#allocation4], 0
    %s13 = scalar_lea.sflag [#allocation4], 1
    %14 = vsyncpa %s13, 0
    loop: start=0, step=1, limit=4
    $region2: #{tpu_custom_call.1} parent=1 // loop_pre_header
      _
    $region3: #{tpu_custom_call.1} parent=1 // loop_header
      %s16 = sphi 0, %s20
      %p17 = scmp.ge.s32.totalorder %s16, 4
      %s26 = sphi 0, %s28
      %s29 = sphi 0, %s26
      %s30 = sphi 0, %s29
      %s46 = sphi 0, %s30
      %s50 = sphi 0, %s50
      %s52 = sphi 0, %s50
      %s53 = sphi 0, %s52
      %s67 = sphi 0, %s53
      %s71 = sphi 0, %s71
      %s73 = sphi 0, %s71
      %s74 = sphi 0, %s73
      %s88 = sphi 0, %s74
      %s94 = sphi 0, %s96
      %s97 = sphi 0, %s94
      %s98 = sphi 0, %s97
      %s114 = sphi 0, %s98
    $region4: #{tpu_custom_call.1} parent=1 // loop_header_branch
      %19 = sbr.rel (%p17) target = $region8
    $region5: #{tpu_custom_call.1} parent=1 // loop_body
      %s21 = ssub.s32 %s16, 1
      %s22 = ssub.s32 %s16, 2
      %s23 = sadd.s32 %s16, 1
      %s24 = ssub.s32 %s16, %s23
      %p25 = scmp.eq.s32.totalorder %s24, 0
      %s27 = sadd.s32 %s26, 1
      %s28 = scalar_select %p25, %s26, %s27
      %p31 = pneg %p25
      %p32 = scmp.eq.s32.totalorder %s16, 1
      %p33 = por %p31, %p32
      %p34 = scmp.ne.s32.totalorder %s26, %s29
      %p35 = scmp.eq.s32.totalorder %s16, 0
      %p36 = por %p34, %p35
      %p37 = scmp.ne.s32.totalorder %s26, %s29
      %p38 = scmp.eq.s32.totalorder %s21, 1
      %p39 = por %p37, %p38
      %p40 = scmp.ne.s32.totalorder %s29, %s30
      %p41 = scmp.eq.s32.totalorder %s21, 0
      %p42 = por %p40, %p41
      %p43 = scmp.ne.s32.totalorder %s29, %s30
      %p44 = scmp.eq.s32.totalorder %s22, 1
      %p45 = por %p43, %p44
      %p47 = scmp.ne.s32.totalorder %s30, %s46
      %p48 = scmp.eq.s32.totalorder %s22, 0
      %p49 = por %p47, %p48
      %s51 = sadd.s32 %s50, 1
      %p54 = scmp.eq.s32.totalorder %s16, 1
      %p55 = scmp.ne.s32.totalorder %s50, %s52
      %p56 = scmp.eq.s32.totalorder %s16, 0
      %p57 = por %p55, %p56
      %p58 = scmp.ne.s32.totalorder %s50, %s52
      %p59 = scmp.eq.s32.totalorder %s21, 1
      %p60 = por %p58, %p59
      %p61 = scmp.ne.s32.totalorder %s52, %s53
      %p62 = scmp.eq.s32.totalorder %s21, 0
      %p63 = por %p61, %p62
      %p64 = scmp.ne.s32.totalorder %s52, %s53
      %p65 = scmp.eq.s32.totalorder %s22, 1
      %p66 = por %p64, %p65
      %p68 = scmp.ne.s32.totalorder %s53, %s67
      %p69 = scmp.eq.s32.totalorder %s22, 0
      %p70 = por %p68, %p69
      %s72 = sadd.s32 %s71, 1
      %p75 = scmp.eq.s32.totalorder %s16, 1
      %p76 = scmp.ne.s32.totalorder %s71, %s73
      %p77 = scmp.eq.s32.totalorder %s16, 0
      %p78 = por %p76, %p77
      %p79 = scmp.ne.s32.totalorder %s71, %s73
      %p80 = scmp.eq.s32.totalorder %s21, 1
      %p81 = por %p79, %p80
      %p82 = scmp.ne.s32.totalorder %s73, %s74
      %p83 = scmp.eq.s32.totalorder %s21, 0
      %p84 = por %p82, %p83
      %p85 = scmp.ne.s32.totalorder %s73, %s74
      %p86 = scmp.eq.s32.totalorder %s22, 1
      %p87 = por %p85, %p86
      %p89 = scmp.ne.s32.totalorder %s74, %s88
      %p90 = scmp.eq.s32.totalorder %s22, 0
      %p91 = por %p89, %p90
      %s92 = ssub.s32 %s16, %s23
      %p93 = scmp.eq.s32.totalorder %s92, 0
      %s95 = sadd.s32 %s94, 1
      %s96 = scalar_select %p93, %s94, %s95
      %p99 = pneg %p93
      %p100 = scmp.eq.s32.totalorder %s16, 1
      %p101 = por %p99, %p100
      %p102 = scmp.ne.s32.totalorder %s94, %s97
      %p103 = scmp.eq.s32.totalorder %s16, 0
      %p104 = por %p102, %p103
      %p105 = scmp.ne.s32.totalorder %s94, %s97
      %p106 = scmp.eq.s32.totalorder %s21, 1
      %p107 = por %p105, %p106
      %p108 = scmp.ne.s32.totalorder %s97, %s98
      %p109 = scmp.eq.s32.totalorder %s21, 0
      %p110 = por %p108, %p109
      %p111 = scmp.ne.s32.totalorder %s97, %s98
      %p112 = scmp.eq.s32.totalorder %s22, 1
      %p113 = por %p111, %p112
      %p115 = scmp.ne.s32.totalorder %s98, %s114
      %p116 = scmp.eq.s32.totalorder %s22, 0
      %p117 = por %p115, %p116
      %p118 = scmp.le.s32.totalorder 1, %s16
      %p119 = scmp.lt.s32.totalorder %s16, 3
      %p120 = pnand %p118, %p119
      %p121 = pneg %p120
      // Predicated region
      $region9: #{tpu_custom_call.1} parent=5 // pred_check
        _
      $region10: #{tpu_custom_call.1} parent=5 // pred_check_branch
        %123 = sbr.rel (%p120) target = $region12
      $region11: #{tpu_custom_call.1} parent=5 // pred_region
        %s124 = ssub.s32 %s16, 1
        // Predicated region
        $region13: #{tpu_custom_call.1} parent=11 // pred_check
          %p125 = pneg %p63
        $region14: #{tpu_custom_call.1} parent=11 // pred_check_branch
          %127 = sbr.rel (%p125) target = $region16
        $region15: #{tpu_custom_call.1} parent=11 // pred_region
          %s129 = ssub.s32 128, 128
          %130 = vsyncadd [#allocation6], %s129
          %s132 = sshll.u32 [#allocation5], 4
          %s133 = int_to_ptr.vmem [resolvable:$true] %s132
          %135 = dma.hbm_to_vmem [thread:$0]  %s1, 128, %s133, [#allocation6]
        $region16: #{tpu_custom_call.1} parent=11 // pred_fallthru
          _
        // Predicated region
        $region17: #{tpu_custom_call.1} parent=11 // pred_check
          %p136 = pneg %p84
        $region18: #{tpu_custom_call.1} parent=11 // pred_check_branch
          %138 = sbr.rel (%p136) target = $region20
        $region19: #{tpu_custom_call.1} parent=11 // pred_region
          %s140 = ssub.s32 128, 128
          %141 = vsyncadd [#allocation6], %s140
          %s143 = sshll.u32 [#allocation7], 4
          %s144 = int_to_ptr.vmem [resolvable:$true] %s143
          %146 = dma.hbm_to_vmem [thread:$0]  %s2, 128, %s144, [#allocation6]
        $region20: #{tpu_custom_call.1} parent=11 // pred_fallthru
          _
      $region12: #{tpu_custom_call.1} parent=5 // pred_fallthru
        _
      %p147 = scmp.lt.s32.totalorder %s16, 2
      // Predicated region
      $region21: #{tpu_custom_call.1} parent=5 // pred_check
        %p148 = pneg %p147
      $region22: #{tpu_custom_call.1} parent=5 // pred_check_branch
        %150 = sbr.rel (%p148) target = $region24
      $region23: #{tpu_custom_call.1} parent=5 // pred_region
        // Predicated region
        $region25: #{tpu_custom_call.1} parent=23 // pred_check
          %p151 = pneg %p36
        $region26: #{tpu_custom_call.1} parent=23 // pred_check_branch
          %153 = sbr.rel (%p151) target = $region28
        $region27: #{tpu_custom_call.1} parent=23 // pred_region
          %s154 = sand.u32 %s26, 1
          %s155 = scalar_lea.sflag [#allocation3], %s154
          %s156 = sand.u32 %s26, 1
          %s157 = smul.addr %s156, 64
          %s158 = scalar_lea.vmem [#allocation2], %s157
          %s160 = ssub.s32 1024, 1024
          %161 = vsyncadd %s155, %s160
          %s162 = smul.addr %s16, 8
          %s163 = smul.addr %s162, 128
          %s164 = scalar_lea.hbm %s0, %s163
          %s165 = sshll.u32 %s158, 4
          %s166 = int_to_ptr.vmem [resolvable:$true] %s165
          %171 = dma.hbm_to_vmem [thread:$0]  %s164, 1024, %s166, %s155, 256, 256, 16
        $region28: #{tpu_custom_call.1} parent=23 // pred_fallthru
          _
      $region24: #{tpu_custom_call.1} parent=5 // pred_fallthru
        _
      %p172 = scmp.le.s32.totalorder 1, %s16
      %p173 = scmp.lt.s32.totalorder %s16, 3
      %p174 = pnand %p172, %p173
      %p175 = pneg %p174
      // Predicated region
      $region29: #{tpu_custom_call.1} parent=5 // pred_check
        _
      $region30: #{tpu_custom_call.1} parent=5 // pred_check_branch
        %177 = sbr.rel (%p174) target = $region32
      $region31: #{tpu_custom_call.1} parent=5 // pred_region
        %s178 = ssub.s32 %s16, 1
        %s179 = sand.u32 %s29, 1
        %s180 = scalar_lea.sflag [#allocation3], %s179
        %s181 = sand.u32 %s29, 1
        %s182 = smul.addr %s181, 64
        %s183 = scalar_lea.vmem [#allocation2], %s182
        // Predicated region
        $region33: #{tpu_custom_call.1} parent=31 // pred_check
          %p184 = pneg %p42
        $region34: #{tpu_custom_call.1} parent=31 // pred_check_branch
          %186 = sbr.rel (%p184) target = $region36
        $region35: #{tpu_custom_call.1} parent=31 // pred_region
          %187 = dma.done %s180, 1024
        $region36: #{tpu_custom_call.1} parent=31 // pred_fallthru
          _
        // Predicated region
        $region37: #{tpu_custom_call.1} parent=31 // pred_check
          %p188 = pneg %p63
        $region38: #{tpu_custom_call.1} parent=31 // pred_check_branch
          %190 = sbr.rel (%p188) target = $region40
        $region39: #{tpu_custom_call.1} parent=31 // pred_region
          %191 = dma.done [#allocation6], 128
        $region40: #{tpu_custom_call.1} parent=31 // pred_fallthru
          _
        // Predicated region
        $region41: #{tpu_custom_call.1} parent=31 // pred_check
          %p192 = pneg %p84
        $region42: #{tpu_custom_call.1} parent=31 // pred_check_branch
          %194 = sbr.rel (%p192) target = $region44
        $region43: #{tpu_custom_call.1} parent=31 // pred_region
          %195 = dma.done [#allocation6], 128
        $region44: #{tpu_custom_call.1} parent=31 // pred_fallthru
          _
        %s196 = sand.u32 %s29, 1
        %s197 = scalar_lea.sflag [#allocation3], %s196
        %s198 = sand.u32 %s29, 1
        %s199 = smul.addr %s198, 64
        %s200 = scalar_lea.vmem [#allocation2], %s199
        %p201 = pneg %p42
        %p202 = pneg %p39
        %p203 = pneg %p63
        %p204 = pneg %p60
        %p205 = pneg %p84
        %p206 = pneg %p81
        %p207 = pneg %p110
        %p208 = pneg %p107
        %s209 = sand.u32 %s97, 1
        %s210 = scalar_lea.sflag [#allocation4], %s209
        %s211 = sand.u32 %s97, 1
        %s212 = smul.addr %s211, 64
        %s213 = scalar_lea.vmem [#allocation8], %s212
        %v214 = vld [vmem:[%s183] sm:$0xff]
        %v215 = vld [vmem:[%s183 + $0x8] sm:$0xff]
        %v216 = vld [vmem:[%s183 + $0x10] sm:$0xff]
        %v217 = vld [vmem:[%s183 + $0x18] sm:$0xff]
        %v218 = vld [vmem:[%s183 + $0x20] sm:$0xff]
        %v219 = vld [vmem:[%s183 + $0x28] sm:$0xff]
        %v220 = vld [vmem:[%s183 + $0x30] sm:$0xff]
        %v221 = vld [vmem:[%s183 + $0x38] sm:$0xff]
        %vm222 = vcmask 556032
        %v223 = vsel %vm222, %v215, 0.0
        %v224 = vadd.f32 %v214, %v223
        %225 = vadd.xlane.f32.xlu0 %v224
        %v226 = vpop.xlane.xlu0 %225
        %v227 = vsel %vm222, %v217, 0.0
        %v228 = vadd.f32 %v216, %v227
        %229 = vadd.xlane.f32.xlu0 %v228
        %v230 = vpop.xlane.xlu0 %229
        %v231 = vsel %vm222, %v219, 0.0
        %v232 = vadd.f32 %v218, %v231
        %233 = vadd.xlane.f32.xlu0 %v232
        %v234 = vpop.xlane.xlu0 %233
        %v235 = vsel %vm222, %v221, 0.0
        %v236 = vadd.f32 %v220, %v235
        %237 = vadd.xlane.f32.xlu0 %v236
        %v238 = vpop.xlane.xlu0 %237
        %v239 = vmul.f32 %v226, 0.0051020407
        %v240 = vmul.f32 %v230, 0.0051020407
        %v241 = vmul.f32 %v234, 0.0051020407
        %v242 = vmul.f32 %v238, 0.0051020407
        %v243 = vsel %vm222, %v215, -inf
        %v244 = vmax.f32 %v214, %v243
        %245 = vmax.xlane.f32.xlu0 %v244
        %v246 = vpop.xlane.xlu0 %245
        %v247 = vsel %vm222, %v217, -inf
        %v248 = vmax.f32 %v216, %v247
        %249 = vmax.xlane.f32.xlu0 %v248
        %v250 = vpop.xlane.xlu0 %249
        %v251 = vsel %vm222, %v219, -inf
        %v252 = vmax.f32 %v218, %v251
        %253 = vmax.xlane.f32.xlu0 %v252
        %v254 = vpop.xlane.xlu0 %253
        %v255 = vsel %vm222, %v221, -inf
        %v256 = vmax.f32 %v220, %v255
        %257 = vmax.xlane.f32.xlu0 %v256
        %v258 = vpop.xlane.xlu0 %257
        %v263 = vlaneseq
        %v264 = vand.u32 %v263, 127
        %v265 = vlaneseq
        %v266 = vshrl.u32 %v265, 7
        %v267 = vsub.s32 %v264, %v266
        %v268 = vrot.slane %v239, %v267
        %v269 = vadd.s32 %v264, 4294967288
        %v270 = vlaneseq
        %v271 = vshrl.u32 %v270, 7
        %v272 = vsub.s32 %v269, %v271
        %v273 = vrot.slane %v240, %v272
        %vm274 = vcmask 130112
        %v275 = vsel %vm274, %v273, %v268
        %v276 = vadd.s32 %v264, 4294967280
        %v277 = vlaneseq
        %v278 = vshrl.u32 %v277, 7
        %v279 = vsub.s32 %v276, %v278
        %v280 = vrot.slane %v241, %v279
        %vm281 = vcmask 195712
        %v282 = vsel %vm281, %v280, %v275
        %v283 = vadd.s32 %v264, 4294967272
        %v284 = vlaneseq
        %v285 = vshrl.u32 %v284, 7
        %v286 = vsub.s32 %v283, %v285
        %v287 = vrot.slane %v242, %v286
        %vm288 = vcmask 261312
        %v289 = vsel %vm288, %v287, %v282
        %v295 = vlaneseq
        %v296 = vshrl.u32 %v295, 7
        %v297 = vsub.s32 %v264, %v296
        %v298 = vrot.slane %v246, %v297
        %v299 = vlaneseq
        %v300 = vshrl.u32 %v299, 7
        %v301 = vsub.s32 %v269, %v300
        %v302 = vrot.slane %v250, %v301
        %v303 = vsel %vm274, %v302, %v298
        %v304 = vlaneseq
        %v305 = vshrl.u32 %v304, 7
        %v306 = vsub.s32 %v276, %v305
        %v307 = vrot.slane %v254, %v306
        %v308 = vsel %vm281, %v307, %v303
        %v309 = vlaneseq
        %v310 = vshrl.u32 %v309, 7
        %v311 = vsub.s32 %v283, %v310
        %v312 = vrot.slane %v258, %v311
        %v313 = vsel %vm288, %v312, %v308
        %vm315 = vcmask 1040384
        %v316 = vsel %vm315, %v289, %v313
        %v317 = vld [vmem:[#allocation5] sm:$0xff]
        %v318 = vld [vmem:[#allocation7] sm:$0xff]
        %vm319 = vcmask 261120
        %v321 = vsel %vm319, %v316, 0
        %v324 = vsel %vm319, %v317, 0
        %326 = vmatprep.subr.mxu0 0.0
        %327 = vmatpush1.xpose.msra.mxu0 %v324
        %328 = vmatprep.subr.mxu0 0.0
        %329 = vmatpush1.xpose.msra.mxu0 0.0
        %330 = vmatprep.subr.mxu0 0.0
        %331 = vmatpush1.xpose.msra.mxu0 0.0
        %332 = vmatprep.subr.mxu0 0.0
        %333 = vmatpush1.xpose.msra.mxu0 0.0
        %334 = vmatprep.subr.mxu0 0.0
        %335 = vmatpush1.xpose.msra.mxu0 0.0
        %336 = vmatprep.subr.mxu0 0.0
        %337 = vmatpush1.xpose.msra.mxu0 0.0
        %338 = vmatprep.subr.mxu0 0.0
        %339 = vmatpush1.xpose.msra.mxu0 0.0
        %340 = vmatprep.subr.mxu0 0.0
        %341 = vmatpush1.xpose.msra.mxu0 0.0
        %342 = vmatprep.subr.mxu0 0.0
        %343 = vmatpush1.xpose.msra.mxu0 0.0
        %344 = vmatprep.subr.mxu0 0.0
        %345 = vmatpush1.xpose.msra.mxu0 0.0
        %346 = vmatprep.subr.mxu0 0.0
        %347 = vmatpush1.xpose.msra.mxu0 0.0
        %348 = vmatprep.subr.mxu0 0.0
        %349 = vmatpush1.xpose.msra.mxu0 0.0
        %350 = vmatprep.subr.mxu0 0.0
        %351 = vmatpush1.xpose.msra.mxu0 0.0
        %352 = vmatprep.subr.mxu0 0.0
        %353 = vmatpush1.xpose.msra.mxu0 0.0
        %354 = vmatprep.subr.mxu0 0.0
        %355 = vmatpush1.xpose.msra.mxu0 0.0
        %356 = vmatprep.subr.mxu0 0.0
        %357 = vmatpush1.xpose.msra.mxu0 0.0
        %358 = vmatprep.subr.mxu0 0.0
        %359 = vmatpush1.xpose.msra.mxu0 0.0
        %360 = vmatprep.subr.mxu0 0.0
        %361 = vmatpush1.xpose.msra.mxu0 0.0
        %362 = vmatprep.subr.mxu0 0.0
        %363 = vmatpush1.xpose.msra.mxu0 0.0
        %364 = vmatprep.subr.mxu0 0.0
        %365 = vmatpush1.xpose.msra.mxu0 0.0
        %366 = vmatprep.subr.mxu0 0.0
        %367 = vmatpush1.xpose.msra.mxu0 0.0
        %368 = vmatprep.subr.mxu0 0.0
        %369 = vmatpush1.xpose.msra.mxu0 0.0
        %370 = vmatprep.subr.mxu0 0.0
        %371 = vmatpush1.xpose.msra.mxu0 0.0
        %372 = vmatprep.subr.mxu0 0.0
        %373 = vmatpush1.xpose.msra.mxu0 0.0
        %374 = vmatprep.subr.mxu0 0.0
        %375 = vmatpush1.xpose.msra.mxu0 0.0
        %376 = vmatprep.subr.mxu0 0.0
        %377 = vmatpush1.xpose.msra.mxu0 0.0
        %378 = vmatprep.subr.mxu0 0.0
        %379 = vmatpush1.xpose.msra.mxu0 0.0
        %380 = vmatprep.subr.mxu0 0.0
        %381 = vmatpush1.xpose.msra.mxu0 0.0
        %382 = vmatprep.subr.mxu0 0.0
        %383 = vmatpush1.xpose.msra.mxu0 0.0
        %384 = vmatprep.subr.mxu0 0.0
        %385 = vmatpush1.xpose.msra.mxu0 0.0
        %386 = vmatprep.subr.mxu0 0.0
        %387 = vmatpush1.xpose.msra.mxu0 0.0
        %388 = vmatprep.subr.mxu0 0.0
        %389 = vmatpush1.xpose.msra.mxu0 0.0
        %390 = vmatprep.mubr.f32.mxu0 0.0
        %391 = vmatmul.mubr.f32.gmra.mrb[0].mxu0 %v321
        %v392 = vpop.f32.mrb[0].mxu0
        %v393 = vadd.f32 0.0, %v392
        %v394 = vpop.f32.mrb[0].mxu0
        %395 = vdwg.mxu0
        %v396 = vmax.f32 %v393, 0.0
        %vm397 = vcmask 64512
        %v399 = vsel %vm397, %v396, 0
        %401 = vmatprep.subr.mxu0 0.0
        %402 = vmatpush1.msra.mxu0 %v318
        %403 = vmatprep.subr.mxu0 0.0
        %404 = vmatpush1.msra.mxu0 0.0
        %405 = vmatprep.subr.mxu0 0.0
        %406 = vmatpush1.msra.mxu0 0.0
        %407 = vmatprep.subr.mxu0 0.0
        %408 = vmatpush1.msra.mxu0 0.0
        %409 = vmatprep.subr.mxu0 0.0
        %410 = vmatpush1.msra.mxu0 0.0
        %411 = vmatprep.subr.mxu0 0.0
        %412 = vmatpush1.msra.mxu0 0.0
        %413 = vmatprep.subr.mxu0 0.0
        %414 = vmatpush1.msra.mxu0 0.0
        %415 = vmatprep.subr.mxu0 0.0
        %416 = vmatpush1.msra.mxu0 0.0
        %417 = vmatprep.subr.mxu0 0.0
        %418 = vmatpush1.msra.mxu0 0.0
        %419 = vmatprep.subr.mxu0 0.0
        %420 = vmatpush1.msra.mxu0 0.0
        %421 = vmatprep.subr.mxu0 0.0
        %422 = vmatpush1.msra.mxu0 0.0
        %423 = vmatprep.subr.mxu0 0.0
        %424 = vmatpush1.msra.mxu0 0.0
        %425 = vmatprep.subr.mxu0 0.0
        %426 = vmatpush1.msra.mxu0 0.0
        %427 = vmatprep.subr.mxu0 0.0
        %428 = vmatpush1.msra.mxu0 0.0
        %429 = vmatprep.subr.mxu0 0.0
        %430 = vmatpush1.msra.mxu0 0.0
        %431 = vmatprep.subr.mxu0 0.0
        %432 = vmatpush1.msra.mxu0 0.0
        %433 = vmatprep.subr.mxu0 0.0
        %434 = vmatpush1.msra.mxu0 0.0
        %435 = vmatprep.subr.mxu0 0.0
        %436 = vmatpush1.msra.mxu0 0.0
        %437 = vmatprep.subr.mxu0 0.0
        %438 = vmatpush1.msra.mxu0 0.0
        %439 = vmatprep.subr.mxu0 0.0
        %440 = vmatpush1.msra.mxu0 0.0
        %441 = vmatprep.subr.mxu0 0.0
        %442 = vmatpush1.msra.mxu0 0.0
        %443 = vmatprep.subr.mxu0 0.0
        %444 = vmatpush1.msra.mxu0 0.0
        %445 = vmatprep.subr.mxu0 0.0
        %446 = vmatpush1.msra.mxu0 0.0
        %447 = vmatprep.subr.mxu0 0.0
        %448 = vmatpush1.msra.mxu0 0.0
        %449 = vmatprep.subr.mxu0 0.0
        %450 = vmatpush1.msra.mxu0 0.0
        %451 = vmatprep.subr.mxu0 0.0
        %452 = vmatpush1.msra.mxu0 0.0
        %453 = vmatprep.subr.mxu0 0.0
        %454 = vmatpush1.msra.mxu0 0.0
        %455 = vmatprep.subr.mxu0 0.0
        %456 = vmatpush1.msra.mxu0 0.0
        %457 = vmatprep.subr.mxu0 0.0
        %458 = vmatpush1.msra.mxu0 0.0
        %459 = vmatprep.subr.mxu0 0.0
        %460 = vmatpush1.msra.mxu0 0.0
        %461 = vmatprep.subr.mxu0 0.0
        %462 = vmatpush1.msra.mxu0 0.0
        %463 = vmatprep.subr.mxu0 0.0
        %464 = vmatpush1.msra.mxu0 0.0
        %465 = vmatprep.mubr.f32.mxu0 0.0
        %466 = vmatmul.mubr.f32.gmra.mrb[0].mxu0 %v399
        %v467 = vpop.f32.mrb[0].mxu0
        %v468 = vadd.f32 0.0, %v467
        %v469 = vpop.f32.mrb[0].mxu0
        %470 = vdwg.mxu0
        %v471 = vxor.u32 %v468, 2147483648
        %v472 = vmul.f32 %v471, 1.442695
        %v473 = vpow.pop %v472
        %v474 = vadd.f32 %v473, 1.0
        %v475 = vrcp.pop %v474
        %v476 = vmul.f32 1.0, %v475
        %v478 = vrot.slane %v476, 1
        %v480 = vadd.f32 %v476, %v478
        %v481 = vlaneseq
        %v482 = vshrl.u32 %v481, 7
        %v483 = vsub.s32 0, %v482
        %v484 = vrot.slane %v480, %v483
        %486 = vbcast.lane.b32.xlu0 %v484, 256
        %v487 = vpop.permute.xlu0 %486
        %s489 = sor.u32 256, 8
        %490 = vbcast.lane.b32.xlu0 %v484, %s489
        %v491 = vpop.permute.xlu0 %490
        %s493 = sor.u32 256, 16
        %494 = vbcast.lane.b32.xlu0 %v484, %s493
        %v495 = vpop.permute.xlu0 %494
        %s497 = sor.u32 256, 24
        %498 = vbcast.lane.b32.xlu0 %v484, %s497
        %v499 = vpop.permute.xlu0 %498
        %v500 = vmul.f32 %v214, %v487
        %v501 = vmul.f32 %v215, %v487
        %v502 = vmul.f32 %v216, %v491
        %v503 = vmul.f32 %v217, %v491
        %v504 = vmul.f32 %v218, %v495
        %v505 = vmul.f32 %v219, %v495
        %v506 = vmul.f32 %v220, %v499
        %v507 = vmul.f32 %v221, %v499
        %508 = vst [vmem:[%s213] sm:$0xff] %v500
        %509 = vst.msk [vmem:[%s213 + $0x8] sm:$0xff] %vm222, %v501
        %510 = vst [vmem:[%s213 + $0x10] sm:$0xff] %v502
        %511 = vst.msk [vmem:[%s213 + $0x18] sm:$0xff] %vm222, %v503
        %512 = vst [vmem:[%s213 + $0x20] sm:$0xff] %v504
        %513 = vst.msk [vmem:[%s213 + $0x28] sm:$0xff] %vm222, %v505
        %514 = vst [vmem:[%s213 + $0x30] sm:$0xff] %v506
        %515 = vst.msk [vmem:[%s213 + $0x38] sm:$0xff] %vm222, %v507
        %s516 = sand.u32 %s97, 1
        %s517 = scalar_lea.sflag [#allocation4], %s516
        %s518 = sand.u32 %s97, 1
        %s519 = smul.addr %s518, 64
        %s520 = scalar_lea.vmem [#allocation8], %s519
        // Predicated region
        $region45: #{tpu_custom_call.1} parent=31 // pred_check
          %p521 = pneg %p107
        $region46: #{tpu_custom_call.1} parent=31 // pred_check_branch
          %523 = sbr.rel (%p521) target = $region48
        $region47: #{tpu_custom_call.1} parent=31 // pred_region
          %s525 = ssub.s32 1024, 1024
          %526 = vsyncadd %s517, %s525
          %s527 = smul.addr %s21, 8
          %s528 = smul.addr %s527, 128
          %s529 = scalar_lea.hbm %s3, %s528
          %s530 = sshll.u32 %s520, 4
          %s531 = int_to_ptr.vmem [resolvable:$true] %s530
          %536 = dma.vmem_to_hbm [thread:$0]  %s531, 1024, %s529, %s517, 256, 256, 16
        $region48: #{tpu_custom_call.1} parent=31 // pred_fallthru
          _
      $region32: #{tpu_custom_call.1} parent=5 // pred_fallthru
        _
      %p537 = scmp.le.s32.totalorder 2, %s16
      // Predicated region
      $region49: #{tpu_custom_call.1} parent=5 // pred_check
        %p538 = pneg %p537
      $region50: #{tpu_custom_call.1} parent=5 // pred_check_branch
        %540 = sbr.rel (%p538) target = $region52
      $region51: #{tpu_custom_call.1} parent=5 // pred_region
        %s541 = ssub.s32 %s16, 2
        // Predicated region
        $region53: #{tpu_custom_call.1} parent=51 // pred_check
          %p542 = pneg %p113
        $region54: #{tpu_custom_call.1} parent=51 // pred_check_branch
          %544 = sbr.rel (%p542) target = $region56
        $region55: #{tpu_custom_call.1} parent=51 // pred_region
          %s545 = sand.u32 %s98, 1
          %s546 = scalar_lea.sflag [#allocation4], %s545
          %s547 = sand.u32 %s98, 1
          %s548 = smul.addr %s547, 64
          %s549 = scalar_lea.vmem [#allocation8], %s548
          %550 = dma.done %s546, 1024
        $region56: #{tpu_custom_call.1} parent=51 // pred_fallthru
          _
      $region52: #{tpu_custom_call.1} parent=5 // pred_fallthru
        _
    $region6: #{tpu_custom_call.1} parent=1 // loop_footer
      %s20 = sadd.s32 1, %s16
    $region7: #{tpu_custom_call.1} parent=1 // loop_footer_branch
      %15 = sbr.rel target = $region3
    $region8: #{tpu_custom_call.1} parent=1 // loop_exit
      _
    %551 = vsyncpa [#allocation3], 1
    %s552 = scalar_lea.sflag [#allocation3], 1
    %553 = vsyncpa %s552, 1
    %554 = vsyncpa [#allocation6], 1
    %555 = vsyncpa [#allocation4], 1
    %s556 = scalar_lea.sflag [#allocation4], 1
    %557 = vsyncpa %s556, 1

</llo_original>
